<compile_context>
chip_gen: v7x
topology: tpu7x:2x2x1
jax: 0.10.0
libtpu: 0.0.40
codegen_flags: <defaults>
</compile_context>

<pallas_src>
import jax
import jax.numpy as jnp
from jax import lax
from jax.experimental import pallas as pl
from jax.experimental.pallas import tpu as pltpu


def _round_up(x, m):
    return (x + m - 1) // m * m


def fm_kernel(xn_ref, ids_ref, embt_ref, an_ref, ac_ref, v2n_ref, v2c_ref,
              b_ref, o_ref):
    """One batch tile of the FM forward.

    xn_ref:   [d_num, TB]    compute_dtype  (batch on the 128-lane axis)
    ids_ref:  [seq, TB]      int32 categorical ids for this batch tile
    embt_ref: [d_emb, vocab] f32 embedding table (transposed, VMEM-resident)
    an_ref:   [k+1, d_num]   f32: rows 0..k-1 = v^T, row k = w^T (numerical cols)
    ac_ref:   [k+1, d_emb]   f32: same, categorical columns
    v2n_ref:  [k, d_num]     f32: (v*v)^T numerical cols
    v2c_ref:  [k, d_emb]     f32: (v*v)^T categorical cols
    b_ref:    [1]            f32 bias (SMEM)
    o_ref:    [1, TB]        f32 lane-dense output tile
    """
    tb = o_ref.shape[1]
    seq = ids_ref.shape[0]
    vocab = embt_ref.shape[1]

    # ---- Fused embedding-bag:  xc^T = emb^T @ counts,
    #      counts[v, b] = #{s : ids[s, b] == v}   (duplicates counted, as in
    #      nn.Embedding(categorical_x).sum(dim=1)).
    ids = ids_ref[...]
    iota_v = lax.broadcasted_iota(jnp.int32, (vocab, tb), 0)
    counts = (ids[0:1, :] == iota_v).astype(jnp.float32)
    for s in range(1, seq):
        counts = counts + (ids[s:s + 1, :] == iota_v).astype(jnp.float32)
    xc = jnp.dot(embt_ref[...], counts,
                 preferred_element_type=jnp.float32)               # [d_emb, TB]

    # x stream is narrow (compute_dtype) only in HBM; all math is f32 in-kernel
    # (resident params are f32, costing no HBM bytes) to keep the interaction
    # term's cancellation well-conditioned.
    xn = xn_ref[...].astype(jnp.float32)                            # [d_num, TB]

    # One fused MXU pass per feature group: [k+1, n_g] @ [n_g, TB] -> [k+1, TB]
    axt = (jnp.dot(an_ref[...], xn, preferred_element_type=jnp.float32)
           + jnp.dot(ac_ref[...], xc, preferred_element_type=jnp.float32))
    xv = axt[:-1, :]                      # [k, TB]  = sum_i v_if * x_i
    lin = axt[-1:, :]                     # [1, TB]  = sum_i w_i  * x_i

    # sum_i v_if^2 * x_i^2  (x^2 on the VPU; params resident so this stays f32)
    x2v2 = (jnp.dot(v2n_ref[...], xn * xn, preferred_element_type=jnp.float32)
            + jnp.dot(v2c_ref[...], xc * xc, preferred_element_type=jnp.float32))

    inter = 0.5 * jnp.sum(xv * xv - x2v2, axis=0, keepdims=True)    # [1, TB]
    o_ref[...] = lin + b_ref[0] + inter


def _pick_batch_tile(b, tb):
    """Lane-multiple batch tile; keep >= 2 grid steps when the batch allows."""
    bp128 = _round_up(b, 128)
    if bp128 <= 128:
        return bp128
    if bp128 <= tb:
        return _round_up(pl.cdiv(bp128, 2), 128)   # split for v7x megacore
    return tb


def fm_forward(numerical_x, categorical_x, params, *, tb=8192,
               compute_dtype=jnp.bfloat16):
    """numerical_x: [B, d_num] f32; categorical_x: [B, seq] int.

    Returns [B, 1] f32 logits matching FactorizationMachines.forward.
    """
    emb_table = params["embedding"]          # [vocab, d_emb]
    w = params["linear_w"]                   # [n, 1]
    b = params["linear_b"]                   # [1]
    v = params["v"]                          # [n, k]

    B, d_num = numerical_x.shape
    seq = categorical_x.shape[1]
    vocab, d_emb = emb_table.shape
    n, k = v.shape
    assert n == d_num + d_emb

    # Tiny, grid-invariant parameter blocks (VMEM-resident, f32 for accuracy).
    a = jnp.concatenate([v, w], axis=1).T.astype(jnp.float32)       # [k+1, n]
    v2 = (v.astype(jnp.float32) ** 2).T                             # [k, n]
    a_n, a_c = a[:, :d_num], a[:, d_num:]
    v2_n, v2_c = v2[:, :d_num], v2[:, d_num:]
    emb_t = emb_table.astype(jnp.float32).T                         # [d_emb, vocab]
    b = b.astype(jnp.float32).reshape(1)

    # Batch tiling (lane-dense: batch lives on the 128-lane axis).
    TB = _pick_batch_tile(B, tb)
    Bp = _round_up(B, TB)
    grid = (Bp // TB,)

    # Cast FIRST, then transpose + pad (one fused layout pass under jit).
    xn_t = numerical_x.astype(compute_dtype).T                      # [d_num, B]
    ids_t = categorical_x.astype(jnp.int32).T                       # [seq, B]
    if Bp != B:
        xn_t = jnp.pad(xn_t, ((0, 0), (0, Bp - B)))
        ids_t = jnp.pad(ids_t, ((0, 0), (0, Bp - B)))

    itemsize = jnp.dtype(compute_dtype).itemsize
    flops = Bp * (2 * d_emb * vocab + 2 * (2 * k + 1) * n + seq * vocab
                  + 2 * n + 4 * k + 4)
    bytes_accessed = (Bp * (d_num * itemsize + seq * 4 + 4)
                      + 4 * (d_emb * vocab + (2 * k + 1) * n + 1))

    # VMEM budget from the actual buffers: double-buffered x/ids/out tiles +
    # resident params + in-kernel f32 temporaries, capped for v7x (64 MiB
    # physical / 32 MiB scoped default), floored at the safe 32 MiB.
    tile_bytes = 2 * (d_num * TB * itemsize + seq * TB * 4 + TB * 4)
    resident_bytes = 4 * (d_emb * vocab + (2 * k + 1) * n) + 512
    interm_bytes = 4 * TB * (vocab + d_emb + 2 * d_num + 2 * (k + 1) + 4)
    vmem_limit = int(min(48 * 1024 * 1024,
                         max(32 * 1024 * 1024,
                             2 * (tile_bytes + resident_bytes + interm_bytes))))

    out = pl.pallas_call(
        fm_kernel,
        out_shape=jax.ShapeDtypeStruct((1, Bp), jnp.float32),
        grid_spec=pltpu.PrefetchScalarGridSpec(
            num_scalar_prefetch=0,
            grid=grid,
            in_specs=[
                pl.BlockSpec((d_num, TB), lambda i: (0, i)),        # x_num^T tile
                pl.BlockSpec((seq, TB), lambda i: (0, i)),          # cat ids tile
                pl.BlockSpec((d_emb, vocab), lambda i: (0, 0)),     # emb^T (resident)
                pl.BlockSpec((k + 1, d_num), lambda i: (0, 0)),     # [v^T;w^T] (resident)
                pl.BlockSpec((k + 1, d_emb), lambda i: (0, 0)),
                pl.BlockSpec((k, d_num), lambda i: (0, 0)),         # (v*v)^T (resident)
                pl.BlockSpec((k, d_emb), lambda i: (0, 0)),
                pl.BlockSpec(memory_space=pltpu.MemorySpace.SMEM),  # bias scalar
            ],
            out_specs=pl.BlockSpec((1, TB), lambda i: (0, i)),      # lane-dense output
        ),
        compiler_params=pltpu.CompilerParams(
            dimension_semantics=("parallel",),      # megacore shard over batch
            vmem_limit_bytes=vmem_limit,
        ),
        cost_estimate=pl.CostEstimate(
            flops=flops, transcendentals=0, bytes_accessed=bytes_accessed),
    )(xn_t, ids_t, emb_t, a_n, a_c, v2_n, v2_c, b)

    return out[0, :B].reshape(B, 1)


def fm_reference(numerical_x, categorical_x, params):
    """Pure-JAX reference mirroring the PyTorch forward exactly."""
    emb = jnp.take(params["embedding"], categorical_x, axis=0).sum(axis=1)
    x = jnp.concatenate([numerical_x, emb], axis=1)
    linear = x @ params["linear_w"] + params["linear_b"]
    inter1 = (x @ params["v"]) ** 2
    inter2 = (x ** 2) @ (params["v"] ** 2)
    inter = 0.5 * jnp.sum(inter1 - inter2, axis=1, keepdims=True)
    return linear + inter


if __name__ == "__main__":
    input_numerical_dim = 16
    input_categorical_dim = 32   # vocab size of the embedding
    embedding_dim = 16
    k = 8
    seq = 4                      # categorical features per example
    n = input_numerical_dim + embedding_dim

    key = jax.random.PRNGKey(0)
    k_emb, k_w, k_b, k_v, k_num, k_cat = jax.random.split(key, 6)

    def q(x):
        # Exactly bf16-representable test values: the bf16 x-stream path is then
        # lossless so both dtype paths can be checked against one f32 reference.
        return x.astype(jnp.bfloat16).astype(jnp.float32)

    bound = 1.0 / jnp.sqrt(n)
    params = {
        "embedding": q(jax.random.normal(
            k_emb, (input_categorical_dim, embedding_dim), dtype=jnp.float32)),
        "linear_w": q(jax.random.uniform(
            k_w, (n, 1), minval=-bound, maxval=bound, dtype=jnp.float32)),
        "linear_b": q(jax.random.uniform(
            k_b, (1,), minval=-bound, maxval=bound, dtype=jnp.float32)),
        "v": q(jax.random.normal(k_v, (n, k), dtype=jnp.float32)),
    }

    fm = jax.jit(fm_forward, static_argnames=("tb", "compute_dtype"))

    # Case 1: small batch (single grid step), default bf16 x-stream.
    B1 = 8
    num1 = q(jax.random.normal(k_num, (B1, input_numerical_dim), dtype=jnp.float32))
    cat1 = jax.random.randint(k_cat, (B1, seq), 0, input_categorical_dim,
                              dtype=jnp.int32)
    out1 = jax.block_until_ready(fm(num1, cat1, params))
    ref1 = fm_reference(num1, cat1, params)
    assert out1.shape == (B1, 1)
    assert jnp.allclose(out1, ref1, atol=2e-3, rtol=2e-3), (out1, ref1)

    # Case 2: multi-tile grid with a padded, non-128-multiple batch
    # (covers index_map / pad-slice paths), f32 x-stream.
    B2 = 600
    k_num2, k_cat2 = jax.random.split(jax.random.PRNGKey(1))
    num2 = q(jax.random.normal(k_num2, (B2, input_numerical_dim), dtype=jnp.float32))
    cat2 = jax.random.randint(k_cat2, (B2, seq), 0, input_categorical_dim,
                              dtype=jnp.int32)
    out2 = jax.block_until_ready(fm(num2, cat2, params, tb=256,
                                    compute_dtype=jnp.float32))
    ref2 = fm_reference(num2, cat2, params)
    assert out2.shape == (B2, 1)
    assert jnp.allclose(out2, ref2, atol=2e-3, rtol=2e-3), \
        float(jnp.abs(out2 - ref2).max())

    # Case 3: same multi-tile batch on the default bf16 x-stream.
    out3 = jax.block_until_ready(fm(num2, cat2, params, tb=256))
    assert jnp.allclose(out3, ref2, atol=2e-3, rtol=2e-3), \
        float(jnp.abs(out3 - ref2).max())

    print("KERNEL_OK")
</pallas_src>

<mosaic_0001>
module attributes {stable_mosaic.version = 11 : i64} {
  func.func @fm_kernel(%arg0: i32, %arg1: memref<16x128xbf16, #tpu.memory_space<vmem>>, %arg2: memref<4x128xi32, #tpu.memory_space<vmem>>, %arg3: memref<16x32xf32, #tpu.memory_space<vmem>>, %arg4: memref<9x16xf32, #tpu.memory_space<vmem>>, %arg5: memref<9x16xf32, #tpu.memory_space<vmem>>, %arg6: memref<8x16xf32, #tpu.memory_space<vmem>>, %arg7: memref<8x16xf32, #tpu.memory_space<vmem>>, %arg8: memref<1xf32, #tpu.memory_space<smem>>, %arg9: memref<1x128xf32, #tpu.memory_space<vmem>>) attributes {dimension_semantics = [#tpu.dimension_semantics<parallel>], iteration_bounds = array<i64: 1>, scalar_prefetch = 0 : i64, scratch_operands = 0 : i64, tpu.core_type = #tpu.core_type<tc>, window_params = [{transform_indices = @transform_0, window_bounds = array<i64: 16, 128>}, {transform_indices = @transform_1, window_bounds = array<i64: 4, 128>}, {pipeline_mode = #tpu.pipeline_mode<synchronous>, transform_indices = @transform_2, window_bounds = array<i64: 16, 32>}, {pipeline_mode = #tpu.pipeline_mode<synchronous>, transform_indices = @transform_3, window_bounds = array<i64: 9, 16>}, {pipeline_mode = #tpu.pipeline_mode<synchronous>, transform_indices = @transform_4, window_bounds = array<i64: 9, 16>}, {pipeline_mode = #tpu.pipeline_mode<synchronous>, transform_indices = @transform_5, window_bounds = array<i64: 8, 16>}, {pipeline_mode = #tpu.pipeline_mode<synchronous>, transform_indices = @transform_6, window_bounds = array<i64: 8, 16>}, {transform_indices = @transform_7, window_bounds = array<i64: 1>}, {transform_indices = @transform_8, window_bounds = array<i64: 1, 128>}]} {
    %c0 = arith.constant 0 : index
    %c0_0 = arith.constant 0 : index
    %0 = vector.load %arg2[%c0, %c0_0] : memref<4x128xi32, #tpu.memory_space<vmem>>, vector<4x128xi32>
    %1 = tpu.iota {dimensions = array<i32: 0>} : vector<32x128xi32>
    %2 = vector.extract_strided_slice %0 {offsets = [0, 0], sizes = [1, 128], strides = [1, 1]} : vector<4x128xi32> to vector<1x128xi32>
    %3 = vector.broadcast %2 : vector<1x128xi32> to vector<32x128xi32>
    %4 = arith.cmpi eq, %3, %1 : vector<32x128xi32>
    %5 = arith.extui %4 : vector<32x128xi1> to vector<32x128xi32>
    %6 = arith.sitofp %5 : vector<32x128xi32> to vector<32x128xf32>
    %7 = vector.extract_strided_slice %0 {offsets = [1, 0], sizes = [1, 128], strides = [1, 1]} : vector<4x128xi32> to vector<1x128xi32>
    %8 = vector.broadcast %7 : vector<1x128xi32> to vector<32x128xi32>
    %9 = arith.cmpi eq, %8, %1 : vector<32x128xi32>
    %10 = arith.extui %9 : vector<32x128xi1> to vector<32x128xi32>
    %11 = arith.sitofp %10 : vector<32x128xi32> to vector<32x128xf32>
    %12 = arith.addf %6, %11 : vector<32x128xf32>
    %13 = vector.extract_strided_slice %0 {offsets = [2, 0], sizes = [1, 128], strides = [1, 1]} : vector<4x128xi32> to vector<1x128xi32>
    %14 = vector.broadcast %13 : vector<1x128xi32> to vector<32x128xi32>
    %15 = arith.cmpi eq, %14, %1 : vector<32x128xi32>
    %16 = arith.extui %15 : vector<32x128xi1> to vector<32x128xi32>
    %17 = arith.sitofp %16 : vector<32x128xi32> to vector<32x128xf32>
    %18 = arith.addf %12, %17 : vector<32x128xf32>
    %19 = vector.extract_strided_slice %0 {offsets = [3, 0], sizes = [1, 128], strides = [1, 1]} : vector<4x128xi32> to vector<1x128xi32>
    %20 = vector.broadcast %19 : vector<1x128xi32> to vector<32x128xi32>
    %21 = arith.cmpi eq, %20, %1 : vector<32x128xi32>
    %22 = arith.extui %21 : vector<32x128xi1> to vector<32x128xi32>
    %23 = arith.sitofp %22 : vector<32x128xi32> to vector<32x128xf32>
    %24 = arith.addf %18, %23 : vector<32x128xf32>
    %c0_1 = arith.constant 0 : index
    %c0_2 = arith.constant 0 : index
    %25 = vector.load %arg3[%c0_1, %c0_2] : memref<16x32xf32, #tpu.memory_space<vmem>>, vector<16x32xf32>
    %cst = arith.constant dense<0.000000e+00> : vector<16x128xf32>
    %26 = tpu.matmul %25, %24, %cst {dimension_numbers = #tpu.dot_dimension_numbers<[1], [0], [0], [1], [0, 0, 1, 1], [], []>} : vector<16x32xf32>, vector<32x128xf32>, vector<16x128xf32> -> vector<16x128xf32>
    %c0_3 = arith.constant 0 : index
    %c0_4 = arith.constant 0 : index
    %27 = vector.load %arg1[%c0_3, %c0_4] : memref<16x128xbf16, #tpu.memory_space<vmem>>, vector<16x128xbf16>
    %28 = arith.extf %27 : vector<16x128xbf16> to vector<16x128xf32>
    %c0_5 = arith.constant 0 : index
    %c0_6 = arith.constant 0 : index
    %29 = vector.load %arg4[%c0_5, %c0_6] : memref<9x16xf32, #tpu.memory_space<vmem>>, vector<9x16xf32>
    %cst_7 = arith.constant dense<0.000000e+00> : vector<9x128xf32>
    %30 = tpu.matmul %29, %28, %cst_7 {dimension_numbers = #tpu.dot_dimension_numbers<[1], [0], [0], [1], [0, 0, 1, 1], [], []>} : vector<9x16xf32>, vector<16x128xf32>, vector<9x128xf32> -> vector<9x128xf32>
    %c0_8 = arith.constant 0 : index
    %c0_9 = arith.constant 0 : index
    %31 = vector.load %arg5[%c0_8, %c0_9] : memref<9x16xf32, #tpu.memory_space<vmem>>, vector<9x16xf32>
    %cst_10 = arith.constant dense<0.000000e+00> : vector<9x128xf32>
    %32 = tpu.matmul %31, %26, %cst_10 {dimension_numbers = #tpu.dot_dimension_numbers<[1], [0], [0], [1], [0, 0, 1, 1], [], []>} : vector<9x16xf32>, vector<16x128xf32>, vector<9x128xf32> -> vector<9x128xf32>
    %33 = arith.addf %30, %32 : vector<9x128xf32>
    %34 = vector.extract_strided_slice %33 {offsets = [0, 0], sizes = [8, 128], strides = [1, 1]} : vector<9x128xf32> to vector<8x128xf32>
    %35 = vector.extract_strided_slice %33 {offsets = [8, 0], sizes = [1, 128], strides = [1, 1]} : vector<9x128xf32> to vector<1x128xf32>
    %c0_11 = arith.constant 0 : index
    %c0_12 = arith.constant 0 : index
    %36 = vector.load %arg6[%c0_11, %c0_12] : memref<8x16xf32, #tpu.memory_space<vmem>>, vector<8x16xf32>
    %37 = arith.mulf %28, %28 : vector<16x128xf32>
    %cst_13 = arith.constant dense<0.000000e+00> : vector<8x128xf32>
    %38 = tpu.matmul %36, %37, %cst_13 {dimension_numbers = #tpu.dot_dimension_numbers<[1], [0], [0], [1], [0, 0, 1, 1], [], []>} : vector<8x16xf32>, vector<16x128xf32>, vector<8x128xf32> -> vector<8x128xf32>
    %c0_14 = arith.constant 0 : index
    %c0_15 = arith.constant 0 : index
    %39 = vector.load %arg7[%c0_14, %c0_15] : memref<8x16xf32, #tpu.memory_space<vmem>>, vector<8x16xf32>
    %40 = arith.mulf %26, %26 : vector<16x128xf32>
    %cst_16 = arith.constant dense<0.000000e+00> : vector<8x128xf32>
    %41 = tpu.matmul %39, %40, %cst_16 {dimension_numbers = #tpu.dot_dimension_numbers<[1], [0], [0], [1], [0, 0, 1, 1], [], []>} : vector<8x16xf32>, vector<16x128xf32>, vector<8x128xf32> -> vector<8x128xf32>
    %42 = arith.addf %38, %41 : vector<8x128xf32>
    %43 = arith.mulf %34, %34 : vector<8x128xf32>
    %44 = arith.subf %43, %42 : vector<8x128xf32>
    %cst_17 = arith.constant dense<0.000000e+00> : vector<128xf32>
    %45 = vector.multi_reduction <add>, %44, %cst_17 [0] : vector<8x128xf32> to vector<128xf32>
    %46 = vector.shape_cast %45 : vector<128xf32> to vector<1x128xf32>
    %cst_18 = arith.constant 5.000000e-01 : f32
    %47 = vector.broadcast %cst_18 : f32 to vector<1x128xf32>
    %48 = arith.mulf %47, %46 : vector<1x128xf32>
    %c0_19 = arith.constant 0 : index
    %49 = memref.load %arg8[%c0_19] : memref<1xf32, #tpu.memory_space<smem>>
    %50 = vector.broadcast %49 : f32 to vector<1x128xf32>
    %51 = arith.addf %35, %50 : vector<1x128xf32>
    %52 = arith.addf %51, %48 : vector<1x128xf32>
    %c0_20 = arith.constant 0 : index
    %c0_21 = arith.constant 0 : index
    %53 = vector.load %arg9[%c0_20, %c0_21] : memref<1x128xf32, #tpu.memory_space<vmem>>, vector<1x128xf32>
    tpu.vector_store %arg9[%c0_20, %c0_21], %52 {strides = array<i32>} : memref<1x128xf32, #tpu.memory_space<vmem>>, vector<1x128xf32>,
    return
  }
  func.func @transform_0(%arg0: i32) -> (i32, i32) {
    %c0_i32 = arith.constant 0 : i32
    %c0_i32_0 = arith.constant 0 : i32
    return %c0_i32, %arg0 : i32, i32
  }
  func.func @transform_1(%arg0: i32) -> (i32, i32) {
    %c0_i32 = arith.constant 0 : i32
    %c0_i32_0 = arith.constant 0 : i32
    return %c0_i32, %arg0 : i32, i32
  }
  func.func @transform_2(%arg0: i32) -> (i32, i32) {
    %c0_i32 = arith.constant 0 : i32
    %c0_i32_0 = arith.constant 0 : i32
    %c0_i32_1 = arith.constant 0 : i32
    return %c0_i32, %c0_i32_0 : i32, i32
  }
  func.func @transform_3(%arg0: i32) -> (i32, i32) {
    %c0_i32 = arith.constant 0 : i32
    %c0_i32_0 = arith.constant 0 : i32
    %c0_i32_1 = arith.constant 0 : i32
    return %c0_i32, %c0_i32_0 : i32, i32
  }
  func.func @transform_4(%arg0: i32) -> (i32, i32) {
    %c0_i32 = arith.constant 0 : i32
    %c0_i32_0 = arith.constant 0 : i32
    %c0_i32_1 = arith.constant 0 : i32
    return %c0_i32, %c0_i32_0 : i32, i32
  }
  func.func @transform_5(%arg0: i32) -> (i32, i32) {
    %c0_i32 = arith.constant 0 : i32
    %c0_i32_0 = arith.constant 0 : i32
    %c0_i32_1 = arith.constant 0 : i32
    return %c0_i32, %c0_i32_0 : i32, i32
  }
  func.func @transform_6(%arg0: i32) -> (i32, i32) {
    %c0_i32 = arith.constant 0 : i32
    %c0_i32_0 = arith.constant 0 : i32
    %c0_i32_1 = arith.constant 0 : i32
    return %c0_i32, %c0_i32_0 : i32, i32
  }
  func.func @transform_7(%arg0: i32) -> i32 {
    %c0_i32 = arith.constant 0 : i32
    %c0_i32_0 = arith.constant 0 : i32
    return %c0_i32 : i32
  }
  func.func @transform_8(%arg0: i32) -> (i32, i32) {
    %c0_i32 = arith.constant 0 : i32
    %c0_i32_0 = arith.constant 0 : i32
    return %c0_i32, %arg0 : i32, i32
  }
}

</mosaic_0001>

<llo_original>
// kernel: fm_forward.1
$region0: #{fm_forward.1}
  #allocation0 [shape = 'u32[]', space=smem, size = 0x4, offset = 0x4, fixed_abs, tag = 'smem constant byte address 0x4 - core index']
  #allocation1 [shape = 'u32[144,128]{1,0:T(1,128)}', space=vmem, size = 0x12000, scoped, tag = 'internal scratch']
  #allocation2 [shape = 'f32[1]{0:T(128)S(6)}', space=smem, size = 0x200, scoped, tag = 'scoped memory for fm_forward.1']
  %s0 = inlined_call_operand.vmem [shape: bf16[16,128], index: 0, kind: input, shape index: {}]
  %s1 = inlined_call_operand.vmem [shape: s32[4,128], index: 1, kind: input, shape index: {}]
  %s2 = inlined_call_operand.vmem [shape: f32[16,32], index: 2, kind: input, shape index: {}]
  %s3 = inlined_call_operand.vmem [shape: f32[9,16], index: 3, kind: input, shape index: {}]
  %s4 = inlined_call_operand.vmem [shape: f32[9,16], index: 4, kind: input, shape index: {}]
  %s5 = inlined_call_operand.vmem [shape: f32[8,16], index: 5, kind: input, shape index: {}]
  %s6 = inlined_call_operand.vmem [shape: f32[8,16], index: 6, kind: input, shape index: {}]
  %s7 = inlined_call_operand.<no memory space> [shape: f32[1], index: 7, kind: input, shape index: {}]
  %s8 = inlined_call_operand.vmem [shape: f32[1,128], index: 8, kind: output, shape index: {}]
  %s9 = sld [smem:[#allocation0]]
  $region42: #{fm_forward.1} parent=0
    _
  %s11 = ssub.s32 1, %s9
  %s12 = scalar_select 0, %s11, %s9
  %13 = sst [smem:[#allocation2]] %s7
  // Predicated region
  $region2: #{fm_forward.1} parent=0 // pred_check
    _
  $region3: #{fm_forward.1} parent=0 // pred_check_branch
    %15 = sbr.rel (0) target = $region5
  $region4: #{fm_forward.1} parent=0 // pred_region
    _
  $region5: #{fm_forward.1} parent=0 // pred_fallthru
    _
  // Predicated region
  $region6: #{fm_forward.1} parent=0 // pred_check
    _
  $region7: #{fm_forward.1} parent=0 // pred_check_branch
    %17 = sbr.rel (0) target = $region9
  $region8: #{fm_forward.1} parent=0 // pred_region
    _
  $region9: #{fm_forward.1} parent=0 // pred_fallthru
    _
  // Predicated region
  $region10: #{fm_forward.1} parent=0 // pred_check
    _
  $region11: #{fm_forward.1} parent=0 // pred_check_branch
    %19 = sbr.rel (0) target = $region13
  $region12: #{fm_forward.1} parent=0 // pred_region
    _
  $region13: #{fm_forward.1} parent=0 // pred_fallthru
    _
  // Predicated region
  $region14: #{fm_forward.1} parent=0 // pred_check
    _
  $region15: #{fm_forward.1} parent=0 // pred_check_branch
    %21 = sbr.rel (0) target = $region17
  $region16: #{fm_forward.1} parent=0 // pred_region
    _
  $region17: #{fm_forward.1} parent=0 // pred_fallthru
    _
  // Predicated region
  $region18: #{fm_forward.1} parent=0 // pred_check
    _
  $region19: #{fm_forward.1} parent=0 // pred_check_branch
    %23 = sbr.rel (0) target = $region21
  $region20: #{fm_forward.1} parent=0 // pred_region
    _
  $region21: #{fm_forward.1} parent=0 // pred_fallthru
    _
  // Predicated region
  $region22: #{fm_forward.1} parent=0 // pred_check
    _
  $region23: #{fm_forward.1} parent=0 // pred_check_branch
    %25 = sbr.rel (0) target = $region25
  $region24: #{fm_forward.1} parent=0 // pred_region
    _
  $region25: #{fm_forward.1} parent=0 // pred_fallthru
    _
  // Predicated region
  $region26: #{fm_forward.1} parent=0 // pred_check
    _
  $region27: #{fm_forward.1} parent=0 // pred_check_branch
    %27 = sbr.rel (0) target = $region29
  $region28: #{fm_forward.1} parent=0 // pred_region
    _
  $region29: #{fm_forward.1} parent=0 // pred_fallthru
    _
  // Predicated region
  $region30: #{fm_forward.1} parent=0 // pred_check
    _
  $region31: #{fm_forward.1} parent=0 // pred_check_branch
    %29 = sbr.rel (0) target = $region33
  $region32: #{fm_forward.1} parent=0 // pred_region
    _
  $region33: #{fm_forward.1} parent=0 // pred_fallthru
    _
  %v30 = vld [vmem:[%s1] sm:$0xf]
  %v31 = vlaneseq
  %v32 = vshrl.u32 %v31, 7
  %v33 = vadd.s32 %v32, 8
  %v34 = vadd.s32 %v32, 16
  %v35 = vadd.s32 %v32, 24
  %v36 = vlaneseq
  %v37 = vshrl.u32 %v36, 7
  %v38 = vsub.s32 0, %v37
  %v39 = vrot.slane %v30, %v38
  %vm40 = vcmp.eq.s32.totalorder %v39, %v32
  %vm41 = vcmp.eq.s32.totalorder %v39, %v33
  %vm42 = vcmp.eq.s32.totalorder %v39, %v34
  %vm43 = vcmp.eq.s32.totalorder %v39, %v35
  %v44 = vsel %vm40, 1, 0
  %v45 = vsel %vm41, 1, 0
  %v46 = vsel %vm42, 1, 0
  %v47 = vsel %vm43, 1, 0
  %v48 = vcvt.s32.f32 %v44
  %v49 = vcvt.s32.f32 %v45
  %v50 = vcvt.s32.f32 %v46
  %v51 = vcvt.s32.f32 %v47
  %v52 = vlaneseq
  %v53 = vshrl.u32 %v52, 7
  %v54 = vsub.s32 1, %v53
  %v55 = vrot.slane %v30, %v54
  %vm56 = vcmp.eq.s32.totalorder %v55, %v32
  %vm57 = vcmp.eq.s32.totalorder %v55, %v33
  %vm58 = vcmp.eq.s32.totalorder %v55, %v34
  %vm59 = vcmp.eq.s32.totalorder %v55, %v35
  %v60 = vsel %vm56, 1, 0
  %v61 = vsel %vm57, 1, 0
  %v62 = vsel %vm58, 1, 0
  %v63 = vsel %vm59, 1, 0
  %v64 = vcvt.s32.f32 %v60
  %v65 = vcvt.s32.f32 %v61
  %v66 = vcvt.s32.f32 %v62
  %v67 = vcvt.s32.f32 %v63
  %v68 = vadd.f32 %v48, %v64
  %v69 = vadd.f32 %v49, %v65
  %v70 = vadd.f32 %v50, %v66
  %v71 = vadd.f32 %v51, %v67
  %v72 = vlaneseq
  %v73 = vshrl.u32 %v72, 7
  %v74 = vsub.s32 2, %v73
  %v75 = vrot.slane %v30, %v74
  %vm76 = vcmp.eq.s32.totalorder %v75, %v32
  %vm77 = vcmp.eq.s32.totalorder %v75, %v33
  %vm78 = vcmp.eq.s32.totalorder %v75, %v34
  %vm79 = vcmp.eq.s32.totalorder %v75, %v35
  %v80 = vsel %vm76, 1, 0
  %v81 = vsel %vm77, 1, 0
  %v82 = vsel %vm78, 1, 0
  %v83 = vsel %vm79, 1, 0
  %v84 = vcvt.s32.f32 %v80
  %v85 = vcvt.s32.f32 %v81
  %v86 = vcvt.s32.f32 %v82
  %v87 = vcvt.s32.f32 %v83
  %v88 = vadd.f32 %v68, %v84
  %v89 = vadd.f32 %v69, %v85
  %v90 = vadd.f32 %v70, %v86
  %v91 = vadd.f32 %v71, %v87
  %v92 = vlaneseq
  %v93 = vshrl.u32 %v92, 7
  %v94 = vsub.s32 3, %v93
  %v95 = vrot.slane %v30, %v94
  %vm96 = vcmp.eq.s32.totalorder %v95, %v32
  %vm97 = vcmp.eq.s32.totalorder %v95, %v33
  %vm98 = vcmp.eq.s32.totalorder %v95, %v34
  %vm99 = vcmp.eq.s32.totalorder %v95, %v35
  %v100 = vsel %vm96, 1, 0
  %v101 = vsel %vm97, 1, 0
  %v102 = vsel %vm98, 1, 0
  %v103 = vsel %vm99, 1, 0
  %v104 = vcvt.s32.f32 %v100
  %v105 = vcvt.s32.f32 %v101
  %v106 = vcvt.s32.f32 %v102
  %v107 = vcvt.s32.f32 %v103
  %v108 = vadd.f32 %v88, %v104
  %v109 = vadd.f32 %v89, %v105
  %v110 = vadd.f32 %v90, %v106
  %v111 = vadd.f32 %v91, %v107
  %v112 = vld [vmem:[%s2] sm:$0xff]
  %v113 = vld [vmem:[%s2 + $0x8] sm:$0xff]
  %vm114 = vcmask 261120
  %v116 = vsel %vm114, %v112, 0
  %v119 = vsel %vm114, %v113, 0
  %121 = vmatprep.subr.mxu0 0.0
  %122 = vmatpush1.msra.mxu0 %v108
  %123 = vmatprep.subr.mxu0 0.0
  %124 = vmatpush1.msra.mxu0 %v109
  %125 = vmatprep.subr.mxu0 0.0
  %126 = vmatpush1.msra.mxu0 %v110
  %127 = vmatprep.subr.mxu0 0.0
  %128 = vmatpush1.msra.mxu0 %v111
  %129 = vmatprep.subr.mxu0 0.0
  %130 = vmatpush1.msra.mxu0 0.0
  %131 = vmatprep.subr.mxu0 0.0
  %132 = vmatpush1.msra.mxu0 0.0
  %133 = vmatprep.subr.mxu0 0.0
  %134 = vmatpush1.msra.mxu0 0.0
  %135 = vmatprep.subr.mxu0 0.0
  %136 = vmatpush1.msra.mxu0 0.0
  %137 = vmatprep.subr.mxu0 0.0
  %138 = vmatpush1.msra.mxu0 0.0
  %139 = vmatprep.subr.mxu0 0.0
  %140 = vmatpush1.msra.mxu0 0.0
  %141 = vmatprep.subr.mxu0 0.0
  %142 = vmatpush1.msra.mxu0 0.0
  %143 = vmatprep.subr.mxu0 0.0
  %144 = vmatpush1.msra.mxu0 0.0
  %145 = vmatprep.subr.mxu0 0.0
  %146 = vmatpush1.msra.mxu0 0.0
  %147 = vmatprep.subr.mxu0 0.0
  %148 = vmatpush1.msra.mxu0 0.0
  %149 = vmatprep.subr.mxu0 0.0
  %150 = vmatpush1.msra.mxu0 0.0
  %151 = vmatprep.subr.mxu0 0.0
  %152 = vmatpush1.msra.mxu0 0.0
  %153 = vmatprep.subr.mxu0 0.0
  %154 = vmatpush1.msra.mxu0 0.0
  %155 = vmatprep.subr.mxu0 0.0
  %156 = vmatpush1.msra.mxu0 0.0
  %157 = vmatprep.subr.mxu0 0.0
  %158 = vmatpush1.msra.mxu0 0.0
  %159 = vmatprep.subr.mxu0 0.0
  %160 = vmatpush1.msra.mxu0 0.0
  %161 = vmatprep.subr.mxu0 0.0
  %162 = vmatpush1.msra.mxu0 0.0
  %163 = vmatprep.subr.mxu0 0.0
  %164 = vmatpush1.msra.mxu0 0.0
  %165 = vmatprep.subr.mxu0 0.0
  %166 = vmatpush1.msra.mxu0 0.0
  %167 = vmatprep.subr.mxu0 0.0
  %168 = vmatpush1.msra.mxu0 0.0
  %169 = vmatprep.subr.mxu0 0.0
  %170 = vmatpush1.msra.mxu0 0.0
  %171 = vmatprep.subr.mxu0 0.0
  %172 = vmatpush1.msra.mxu0 0.0
  %173 = vmatprep.subr.mxu0 0.0
  %174 = vmatpush1.msra.mxu0 0.0
  %175 = vmatprep.subr.mxu0 0.0
  %176 = vmatpush1.msra.mxu0 0.0
  %177 = vmatprep.subr.mxu0 0.0
  %178 = vmatpush1.msra.mxu0 0.0
  %179 = vmatprep.subr.mxu0 0.0
  %180 = vmatpush1.msra.mxu0 0.0
  %181 = vmatprep.subr.mxu0 0.0
  %182 = vmatpush1.msra.mxu0 0.0
  %183 = vmatprep.subr.mxu0 0.0
  %184 = vmatpush1.msra.mxu0 0.0
  %185 = vmatprep.mubr.f32.mxu0 0.0
  %186 = vmatmul.mubr.f32.gmra.mrb[0].mxu0 %v116
  %v187 = vpop.f32.mrb[0].mxu0
  %v188 = vadd.f32 0.0, %v187
  %v189 = vpop.f32.mrb[0].mxu0
  %190 = vmatprep.mubr.f32.mxu0 0.0
  %191 = vmatmul.mubr.f32.gmra.mrb[0].mxu0 %v119
  %v192 = vpop.f32.mrb[0].mxu0
  %v193 = vadd.f32 0.0, %v192
  %v194 = vpop.f32.mrb[0].mxu0
  %195 = vdwg.mxu0
  %v196 = vld [vmem:[%s0] sm:$0xf]
  %v197 = vld [vmem:[%s0 + $0x4] sm:$0xf]
  %v198 = vunpack.c.l.bf16 %v196
  %v199 = vunpack.c.l.bf16 %v197
  %v200 = vld [vmem:[%s3] sm:$0xff]
  %v201 = vld [vmem:[%s3 + $0x8] sm:$0x1]
  %v202 = vld [vmem:[%s4] sm:$0xff]
  %v203 = vld [vmem:[%s4 + $0x8] sm:$0x1]
  %vm204 = vcmask 130048
  %v206 = vsel %vm204, %v202, 0
  %v209 = vsel %vm204, %v203, 0
  %211 = vmatprep.subr.mxu0 0.0
  %212 = vmatpush1.msra.mxu0 %v188
  %213 = vmatprep.subr.mxu0 0.0
  %214 = vmatpush1.msra.mxu0 %v193
  %215 = vmatprep.subr.mxu0 0.0
  %216 = vmatpush1.msra.mxu0 0.0
  %217 = vmatprep.subr.mxu0 0.0
  %218 = vmatpush1.msra.mxu0 0.0
  %219 = vmatprep.subr.mxu0 0.0
  %220 = vmatpush1.msra.mxu0 0.0
  %221 = vmatprep.subr.mxu0 0.0
  %222 = vmatpush1.msra.mxu0 0.0
  %223 = vmatprep.subr.mxu0 0.0
  %224 = vmatpush1.msra.mxu0 0.0
  %225 = vmatprep.subr.mxu0 0.0
  %226 = vmatpush1.msra.mxu0 0.0
  %227 = vmatprep.subr.mxu0 0.0
  %228 = vmatpush1.msra.mxu0 0.0
  %229 = vmatprep.subr.mxu0 0.0
  %230 = vmatpush1.msra.mxu0 0.0
  %231 = vmatprep.subr.mxu0 0.0
  %232 = vmatpush1.msra.mxu0 0.0
  %233 = vmatprep.subr.mxu0 0.0
  %234 = vmatpush1.msra.mxu0 0.0
  %235 = vmatprep.subr.mxu0 0.0
  %236 = vmatpush1.msra.mxu0 0.0
  %237 = vmatprep.subr.mxu0 0.0
  %238 = vmatpush1.msra.mxu0 0.0
  %239 = vmatprep.subr.mxu0 0.0
  %240 = vmatpush1.msra.mxu0 0.0
  %241 = vmatprep.subr.mxu0 0.0
  %242 = vmatpush1.msra.mxu0 0.0
  %243 = vmatprep.subr.mxu0 0.0
  %244 = vmatpush1.msra.mxu0 0.0
  %245 = vmatprep.subr.mxu0 0.0
  %246 = vmatpush1.msra.mxu0 0.0
  %247 = vmatprep.subr.mxu0 0.0
  %248 = vmatpush1.msra.mxu0 0.0
  %249 = vmatprep.subr.mxu0 0.0
  %250 = vmatpush1.msra.mxu0 0.0
  %251 = vmatprep.subr.mxu0 0.0
  %252 = vmatpush1.msra.mxu0 0.0
  %253 = vmatprep.subr.mxu0 0.0
  %254 = vmatpush1.msra.mxu0 0.0
  %255 = vmatprep.subr.mxu0 0.0
  %256 = vmatpush1.msra.mxu0 0.0
  %257 = vmatprep.subr.mxu0 0.0
  %258 = vmatpush1.msra.mxu0 0.0
  %259 = vmatprep.subr.mxu0 0.0
  %260 = vmatpush1.msra.mxu0 0.0
  %261 = vmatprep.subr.mxu0 0.0
  %262 = vmatpush1.msra.mxu0 0.0
  %263 = vmatprep.subr.mxu0 0.0
  %264 = vmatpush1.msra.mxu0 0.0
  %265 = vmatprep.subr.mxu0 0.0
  %266 = vmatpush1.msra.mxu0 0.0
  %267 = vmatprep.subr.mxu0 0.0
  %268 = vmatpush1.msra.mxu0 0.0
  %269 = vmatprep.subr.mxu0 0.0
  %270 = vmatpush1.msra.mxu0 0.0
  %271 = vmatprep.subr.mxu0 0.0
  %272 = vmatpush1.msra.mxu0 0.0
  %273 = vmatprep.subr.mxu0 0.0
  %274 = vmatpush1.msra.mxu0 0.0
  %275 = vmatprep.mubr.f32.mxu0 0.0
  %276 = vmatmul.mubr.f32.gmra.mrb[0].mxu0 %v206
  %v277 = vpop.f32.mrb[0].mxu0
  %v278 = vadd.f32 0.0, %v277
  %v279 = vpop.f32.mrb[0].mxu0
  %280 = vmatprep.mubr.f32.mxu0 0.0
  %281 = vmatmul.mubr.f32.gmra.mrb[0].mxu0 %v209
  %v282 = vpop.f32.mrb[0].mxu0
  %v283 = vadd.f32 0.0, %v282
  %v284 = vpop.f32.mrb[0].mxu0
  %285 = vdwg.mxu0
  %v287 = vsel %vm204, %v200, 0
  %v290 = vsel %vm204, %v201, 0
  %292 = vmatprep.subr.mxu0 0.0
  %293 = vmatpush1.msra.mxu0 %v198
  %294 = vmatprep.subr.mxu0 0.0
  %295 = vmatpush1.msra.mxu0 %v199
  %296 = vmatprep.subr.mxu0 0.0
  %297 = vmatpush1.msra.mxu0 0.0
  %298 = vmatprep.subr.mxu0 0.0
  %299 = vmatpush1.msra.mxu0 0.0
  %300 = vmatprep.subr.mxu0 0.0
  %301 = vmatpush1.msra.mxu0 0.0
  %302 = vmatprep.subr.mxu0 0.0
  %303 = vmatpush1.msra.mxu0 0.0
  %304 = vmatprep.subr.mxu0 0.0
  %305 = vmatpush1.msra.mxu0 0.0
  %306 = vmatprep.subr.mxu0 0.0
  %307 = vmatpush1.msra.mxu0 0.0
  %308 = vmatprep.subr.mxu0 0.0
  %309 = vmatpush1.msra.mxu0 0.0
  %310 = vmatprep.subr.mxu0 0.0
  %311 = vmatpush1.msra.mxu0 0.0
  %312 = vmatprep.subr.mxu0 0.0
  %313 = vmatpush1.msra.mxu0 0.0
  %314 = vmatprep.subr.mxu0 0.0
  %315 = vmatpush1.msra.mxu0 0.0
  %316 = vmatprep.subr.mxu0 0.0
  %317 = vmatpush1.msra.mxu0 0.0
  %318 = vmatprep.subr.mxu0 0.0
  %319 = vmatpush1.msra.mxu0 0.0
  %320 = vmatprep.subr.mxu0 0.0
  %321 = vmatpush1.msra.mxu0 0.0
  %322 = vmatprep.subr.mxu0 0.0
  %323 = vmatpush1.msra.mxu0 0.0
  %324 = vmatprep.subr.mxu0 0.0
  %325 = vmatpush1.msra.mxu0 0.0
  %326 = vmatprep.subr.mxu0 0.0
  %327 = vmatpush1.msra.mxu0 0.0
  %328 = vmatprep.subr.mxu0 0.0
  %329 = vmatpush1.msra.mxu0 0.0
  %330 = vmatprep.subr.mxu0 0.0
  %331 = vmatpush1.msra.mxu0 0.0
  %332 = vmatprep.subr.mxu0 0.0
  %333 = vmatpush1.msra.mxu0 0.0
  %334 = vmatprep.subr.mxu0 0.0
  %335 = vmatpush1.msra.mxu0 0.0
  %336 = vmatprep.subr.mxu0 0.0
  %337 = vmatpush1.msra.mxu0 0.0
  %338 = vmatprep.subr.mxu0 0.0
  %339 = vmatpush1.msra.mxu0 0.0
  %340 = vmatprep.subr.mxu0 0.0
  %341 = vmatpush1.msra.mxu0 0.0
  %342 = vmatprep.subr.mxu0 0.0
  %343 = vmatpush1.msra.mxu0 0.0
  %344 = vmatprep.subr.mxu0 0.0
  %345 = vmatpush1.msra.mxu0 0.0
  %346 = vmatprep.subr.mxu0 0.0
  %347 = vmatpush1.msra.mxu0 0.0
  %348 = vmatprep.subr.mxu0 0.0
  %349 = vmatpush1.msra.mxu0 0.0
  %350 = vmatprep.subr.mxu0 0.0
  %351 = vmatpush1.msra.mxu0 0.0
  %352 = vmatprep.subr.mxu0 0.0
  %353 = vmatpush1.msra.mxu0 0.0
  %354 = vmatprep.subr.mxu0 0.0
  %355 = vmatpush1.msra.mxu0 0.0
  %356 = vmatprep.mubr.f32.mxu0 0.0
  %357 = vmatmul.mubr.f32.gmra.mrb[0].mxu0 %v287
  %v358 = vpop.f32.mrb[0].mxu0
  %v359 = vadd.f32 %v278, %v358
  %v360 = vpop.f32.mrb[0].mxu0
  %361 = vmatprep.mubr.f32.mxu0 0.0
  %362 = vmatmul.mubr.f32.gmra.mrb[0].mxu0 %v290
  %v363 = vpop.f32.mrb[0].mxu0
  %v364 = vadd.f32 %v283, %v363
  %v365 = vpop.f32.mrb[0].mxu0
  %366 = vdwg.mxu0
  %v367 = vld [vmem:[%s5] sm:$0xff]
  %v368 = vmul.f32 %v198, %v198
  %v369 = vmul.f32 %v199, %v199
  %v370 = vld [vmem:[%s6] sm:$0xff]
  %v371 = vmul.f32 %v188, %v188
  %v372 = vmul.f32 %v193, %v193
  %v374 = vsel %vm204, %v370, 0
  %376 = vmatprep.subr.mxu0 0.0
  %377 = vmatpush1.msra.mxu0 %v371
  %378 = vmatprep.subr.mxu0 0.0
  %379 = vmatpush1.msra.mxu0 %v372
  %380 = vmatprep.subr.mxu0 0.0
  %381 = vmatpush1.msra.mxu0 0.0
  %382 = vmatprep.subr.mxu0 0.0
  %383 = vmatpush1.msra.mxu0 0.0
  %384 = vmatprep.subr.mxu0 0.0
  %385 = vmatpush1.msra.mxu0 0.0
  %386 = vmatprep.subr.mxu0 0.0
  %387 = vmatpush1.msra.mxu0 0.0
  %388 = vmatprep.subr.mxu0 0.0
  %389 = vmatpush1.msra.mxu0 0.0
  %390 = vmatprep.subr.mxu0 0.0
  %391 = vmatpush1.msra.mxu0 0.0
  %392 = vmatprep.subr.mxu0 0.0
  %393 = vmatpush1.msra.mxu0 0.0
  %394 = vmatprep.subr.mxu0 0.0
  %395 = vmatpush1.msra.mxu0 0.0
  %396 = vmatprep.subr.mxu0 0.0
  %397 = vmatpush1.msra.mxu0 0.0
  %398 = vmatprep.subr.mxu0 0.0
  %399 = vmatpush1.msra.mxu0 0.0
  %400 = vmatprep.subr.mxu0 0.0
  %401 = vmatpush1.msra.mxu0 0.0
  %402 = vmatprep.subr.mxu0 0.0
  %403 = vmatpush1.msra.mxu0 0.0
  %404 = vmatprep.subr.mxu0 0.0
  %405 = vmatpush1.msra.mxu0 0.0
  %406 = vmatprep.subr.mxu0 0.0
  %407 = vmatpush1.msra.mxu0 0.0
  %408 = vmatprep.subr.mxu0 0.0
  %409 = vmatpush1.msra.mxu0 0.0
  %410 = vmatprep.subr.mxu0 0.0
  %411 = vmatpush1.msra.mxu0 0.0
  %412 = vmatprep.subr.mxu0 0.0
  %413 = vmatpush1.msra.mxu0 0.0
  %414 = vmatprep.subr.mxu0 0.0
  %415 = vmatpush1.msra.mxu0 0.0
  %416 = vmatprep.subr.mxu0 0.0
  %417 = vmatpush1.msra.mxu0 0.0
  %418 = vmatprep.subr.mxu0 0.0
  %419 = vmatpush1.msra.mxu0 0.0
  %420 = vmatprep.subr.mxu0 0.0
  %421 = vmatpush1.msra.mxu0 0.0
  %422 = vmatprep.subr.mxu0 0.0
  %423 = vmatpush1.msra.mxu0 0.0
  %424 = vmatprep.subr.mxu0 0.0
  %425 = vmatpush1.msra.mxu0 0.0
  %426 = vmatprep.subr.mxu0 0.0
  %427 = vmatpush1.msra.mxu0 0.0
  %428 = vmatprep.subr.mxu0 0.0
  %429 = vmatpush1.msra.mxu0 0.0
  %430 = vmatprep.subr.mxu0 0.0
  %431 = vmatpush1.msra.mxu0 0.0
  %432 = vmatprep.subr.mxu0 0.0
  %433 = vmatpush1.msra.mxu0 0.0
  %434 = vmatprep.subr.mxu0 0.0
  %435 = vmatpush1.msra.mxu0 0.0
  %436 = vmatprep.subr.mxu0 0.0
  %437 = vmatpush1.msra.mxu0 0.0
  %438 = vmatprep.subr.mxu0 0.0
  %439 = vmatpush1.msra.mxu0 0.0
  %440 = vmatprep.mubr.f32.mxu0 0.0
  %441 = vmatmul.mubr.f32.gmra.mrb[0].mxu0 %v374
  %v442 = vpop.f32.mrb[0].mxu0
  %v443 = vadd.f32 0.0, %v442
  %v444 = vpop.f32.mrb[0].mxu0
  %445 = vdwg.mxu0
  %v447 = vsel %vm204, %v367, 0
  %449 = vmatprep.subr.mxu0 0.0
  %450 = vmatpush1.msra.mxu0 %v368
  %451 = vmatprep.subr.mxu0 0.0
  %452 = vmatpush1.msra.mxu0 %v369
  %453 = vmatprep.subr.mxu0 0.0
  %454 = vmatpush1.msra.mxu0 0.0
  %455 = vmatprep.subr.mxu0 0.0
  %456 = vmatpush1.msra.mxu0 0.0
  %457 = vmatprep.subr.mxu0 0.0
  %458 = vmatpush1.msra.mxu0 0.0
  %459 = vmatprep.subr.mxu0 0.0
  %460 = vmatpush1.msra.mxu0 0.0
  %461 = vmatprep.subr.mxu0 0.0
  %462 = vmatpush1.msra.mxu0 0.0
  %463 = vmatprep.subr.mxu0 0.0
  %464 = vmatpush1.msra.mxu0 0.0
  %465 = vmatprep.subr.mxu0 0.0
  %466 = vmatpush1.msra.mxu0 0.0
  %467 = vmatprep.subr.mxu0 0.0
  %468 = vmatpush1.msra.mxu0 0.0
  %469 = vmatprep.subr.mxu0 0.0
  %470 = vmatpush1.msra.mxu0 0.0
  %471 = vmatprep.subr.mxu0 0.0
  %472 = vmatpush1.msra.mxu0 0.0
  %473 = vmatprep.subr.mxu0 0.0
  %474 = vmatpush1.msra.mxu0 0.0
  %475 = vmatprep.subr.mxu0 0.0
  %476 = vmatpush1.msra.mxu0 0.0
  %477 = vmatprep.subr.mxu0 0.0
  %478 = vmatpush1.msra.mxu0 0.0
  %479 = vmatprep.subr.mxu0 0.0
  %480 = vmatpush1.msra.mxu0 0.0
  %481 = vmatprep.subr.mxu0 0.0
  %482 = vmatpush1.msra.mxu0 0.0
  %483 = vmatprep.subr.mxu0 0.0
  %484 = vmatpush1.msra.mxu0 0.0
  %485 = vmatprep.subr.mxu0 0.0
  %486 = vmatpush1.msra.mxu0 0.0
  %487 = vmatprep.subr.mxu0 0.0
  %488 = vmatpush1.msra.mxu0 0.0
  %489 = vmatprep.subr.mxu0 0.0
  %490 = vmatpush1.msra.mxu0 0.0
  %491 = vmatprep.subr.mxu0 0.0
  %492 = vmatpush1.msra.mxu0 0.0
  %493 = vmatprep.subr.mxu0 0.0
  %494 = vmatpush1.msra.mxu0 0.0
  %495 = vmatprep.subr.mxu0 0.0
  %496 = vmatpush1.msra.mxu0 0.0
  %497 = vmatprep.subr.mxu0 0.0
  %498 = vmatpush1.msra.mxu0 0.0
  %499 = vmatprep.subr.mxu0 0.0
  %500 = vmatpush1.msra.mxu0 0.0
  %501 = vmatprep.subr.mxu0 0.0
  %502 = vmatpush1.msra.mxu0 0.0
  %503 = vmatprep.subr.mxu0 0.0
  %504 = vmatpush1.msra.mxu0 0.0
  %505 = vmatprep.subr.mxu0 0.0
  %506 = vmatpush1.msra.mxu0 0.0
  %507 = vmatprep.subr.mxu0 0.0
  %508 = vmatpush1.msra.mxu0 0.0
  %509 = vmatprep.subr.mxu0 0.0
  %510 = vmatpush1.msra.mxu0 0.0
  %511 = vmatprep.subr.mxu0 0.0
  %512 = vmatpush1.msra.mxu0 0.0
  %513 = vmatprep.mubr.f32.mxu0 0.0
  %514 = vmatmul.mubr.f32.gmra.mrb[0].mxu0 %v447
  %v515 = vpop.f32.mrb[0].mxu0
  %v516 = vadd.f32 %v443, %v515
  %v517 = vpop.f32.mrb[0].mxu0
  %518 = vdwg.mxu0
  %v519 = vmul.f32 %v359, %v359
  %v520 = vsub.f32 %v519, %v516
  %v521 = vrot.slane %v520, 4
  %v522 = vadd.f32 %v520, %v521
  %v523 = vrot.slane %v522, 2
  %v524 = vadd.f32 %v522, %v523
  %v525 = vrot.slane %v524, 1
  %v526 = vadd.f32 %v524, %v525
  %v527 = vmul.f32 %v526, 0.5
  %s528 = sld [smem:[#allocation2]]
  %v529 = vstv %s528
  %v530 = vadd.f32 %v364, %v529
  %v531 = vadd.f32 %v530, %v527
  %532 = vst [vmem:[%s8] sm:$0x1] %v531
  // Predicated region
  $region34: #{fm_forward.1} parent=0 // pred_check
    _
  $region35: #{fm_forward.1} parent=0 // pred_check_branch
    %534 = sbr.rel (0) target = $region37
  $region36: #{fm_forward.1} parent=0 // pred_region
    _
  $region37: #{fm_forward.1} parent=0 // pred_fallthru
    _
  // Predicated region
  $region38: #{fm_forward.1} parent=0 // pred_check
    _
  $region39: #{fm_forward.1} parent=0 // pred_check_branch
    %536 = sbr.rel (0) target = $region41
  $region40: #{fm_forward.1} parent=0 // pred_region
    _
  $region41: #{fm_forward.1} parent=0 // pred_fallthru
    _

</llo_original>
